<compile_context>
chip_gen: v7x
topology: tpu7x:2x2x1
jax: 0.10.0
libtpu: 0.0.40
codegen_flags: <defaults>
</compile_context>

<pallas_src>
import functools

import jax
import jax.numpy as jnp
from jax.experimental import pallas as pl
from jax.experimental.pallas import tpu as pltpu


def _collective_classifier_kernel(x_ref, p_ref, w_ref, g_ref, b_ref, o_ref, *, eps):
    """One batch tile.

    x_ref: (TB, A*H)   rows = all agents' features concatenated (lane-dense)
    p_ref: (A*H, A*H)  segment-averaging operator (1/H inside each HxH block)
    w_ref: (A*H, A*m)  block-diagonal decode weights (bf16)
    g_ref, b_ref: (1, A*H)  LayerNorm affine params, tiled per agent
    o_ref: (TB, A*m)   swish(decoded) output -- single full-tile store
    """
    x = x_ref[...].astype(jnp.float32)
    p = p_ref[...]

    # Per-agent LayerNorm statistics without leaving the lane-dense 2D layout:
    # x @ P broadcasts each agent-segment mean back across that segment.
    mean = jnp.dot(x, p, preferred_element_type=jnp.float32)
    centered = x - mean
    var = jnp.dot(centered * centered, p, preferred_element_type=jnp.float32)
    y = centered * jax.lax.rsqrt(var + eps) * g_ref[...] + b_ref[...]

    # Fused per-agent decode: ONE bf16 matmul against the block-diagonal weight,
    # f32 accumulation on the MXU.
    z = jnp.dot(y.astype(w_ref.dtype), w_ref[...],
                preferred_element_type=jnp.float32)
    o_ref[...] = (z * jax.nn.sigmoid(z)).astype(o_ref.dtype)


def _plan_batch_tiles(B, max_block=1024):
    """Pick (block_b, grid, padded_B): large tiles, >= 2 grid steps when possible."""
    if B <= 16:
        return B, 1, B                        # single tile; block == full dim
    block_b = min(max_block, ((B // 2) // 8) * 8)   # multiple of 8 sublanes, >=2 tiles
    block_b = max(block_b, 8)
    grid = -(-B // block_b)                   # ceil div (trace-time Python ints)
    return block_b, grid, grid * block_b


def collective_classifier_forward(agent_outputs, W_decode, ln_gamma, ln_beta,
                                  *, eps=1e-5, block_b=None,
                                  out_dtype=jnp.float32):
    """agent_outputs: [B, A, H], W_decode: [A, H, m], ln_gamma/ln_beta: [H]."""
    B, A, H = agent_outputs.shape
    assert W_decode.shape[0] == A and W_decode.shape[1] == H
    m = W_decode.shape[2]
    K, N = A * H, A * m

    # ---- wrapper-side, one-time layout prep (all tiny / zero-cost) ----
    x2d = agent_outputs.reshape(B, K)                       # contiguous reshape

    # Block-diagonal decode weight [A*H, A*m], fed to the MXU as bf16.
    # (For very large A*H a batched dot_general would waste fewer MACs; at
    #  classifier-sized A*H the zero blocks ride an otherwise idle MXU.)
    eye = jnp.eye(A, dtype=W_decode.dtype)
    w_bd = jnp.einsum('ab,ahm->ahbm', eye, W_decode).reshape(K, N)
    w_bd = w_bd.astype(jnp.bfloat16)

    # Segment-averaging operator for per-agent LayerNorm statistics (f32).
    seg = jnp.arange(K, dtype=jnp.int32) // H
    p_op = (seg[:, None] == seg[None, :]).astype(jnp.float32) / H

    # LayerNorm affine params tiled across agents -> lane-dense [1, A*H].
    g2d = jnp.tile(ln_gamma.astype(jnp.float32), A).reshape(1, K)
    b2d = jnp.tile(ln_beta.astype(jnp.float32), A).reshape(1, K)

    # ---- batch tiling ----
    if block_b is None:
        block_b, grid, padded_B = _plan_batch_tiles(B)
    else:
        grid = -(-B // block_b)
        padded_B = grid * block_b
    if padded_B != B:
        x2d = jnp.pad(x2d, ((0, padded_B - B), (0, 0)))     # zero rows stay finite

    out2d = pl.pallas_call(
        functools.partial(_collective_classifier_kernel, eps=eps),
        out_shape=jax.ShapeDtypeStruct((padded_B, N), out_dtype),
        grid_spec=pltpu.PrefetchScalarGridSpec(
            num_scalar_prefetch=0,
            grid=(grid,),
            in_specs=[
                pl.BlockSpec((block_b, K), lambda i: (i, 0)),   # x: batch tiled
                pl.BlockSpec((K, K), lambda i: (0, 0)),         # P: resident
                pl.BlockSpec((K, N), lambda i: (0, 0)),         # W_bd: resident
                pl.BlockSpec((1, K), lambda i: (0, 0)),         # gamma: resident
                pl.BlockSpec((1, K), lambda i: (0, 0)),         # beta: resident
            ],
            out_specs=pl.BlockSpec((block_b, N), lambda i: (i, 0)),
        ),
        compiler_params=pltpu.CompilerParams(
            dimension_semantics=("parallel",),      # v7x: 2 TCs split batch tiles
            vmem_limit_bytes=32 * 1024 * 1024,      # tiny footprint; safe on v5e..v7x
        ),
    )(x2d, p_op, w_bd, g2d, b2d)

    out = out2d[:B].reshape(B, A, m)
    if A == 1:
        out = jnp.squeeze(out, axis=1)
    return out


def _reference_forward(agent_outputs, W_decode, ln_gamma, ln_beta, eps=1e-5):
    x = agent_outputs.astype(jnp.float32)
    mean = jnp.mean(x, axis=-1, keepdims=True)
    var = jnp.mean((x - mean) ** 2, axis=-1, keepdims=True)
    y = (x - mean) / jnp.sqrt(var + eps) * ln_gamma + ln_beta
    z = jnp.einsum('bij,ijk->bik', y, W_decode.astype(jnp.float32))
    out = z * jax.nn.sigmoid(z)
    if W_decode.shape[0] == 1:
        out = jnp.squeeze(out, axis=1)
    return out


if __name__ == "__main__":
    # Small shapes consistent with the module's forward: [B, A, H] -> [B, A, m]
    B, A, H, m = 2, 4, 32, 16

    key = jax.random.PRNGKey(0)
    k_x, k_w = jax.random.split(key)

    agent_outputs = jax.random.normal(k_x, (B, A, H), dtype=jnp.float32)

    # Deterministic kaiming_uniform_-style init for W_decode (A, H, m), a=0.5:
    # gain = sqrt(2 / (1 + a^2)), fan_in = H * m, bound = gain * sqrt(3 / fan_in)
    a_slope = 0.5
    gain = (2.0 / (1.0 + a_slope ** 2)) ** 0.5
    fan_in = H * m
    bound = gain * (3.0 / fan_in) ** 0.5
    W_decode = jax.random.uniform(
        k_w, (A, H, m), dtype=jnp.float32, minval=-bound, maxval=bound)

    # LayerNorm params: default torch init (ones / zeros)
    ln_gamma = jnp.ones((H,), dtype=jnp.float32)
    ln_beta = jnp.zeros((H,), dtype=jnp.float32)

    out = collective_classifier_forward(agent_outputs, W_decode, ln_gamma, ln_beta)
    out = jax.block_until_ready(out)

    ref = _reference_forward(agent_outputs, W_decode, ln_gamma, ln_beta)
    assert out.shape == (B, A, m), out.shape
    # Decode matmul runs bf16-in / f32-accumulate on the MXU (per perf review),
    # so compare against the pure-f32 reference with a correspondingly loose
    # tolerance; LN statistics themselves stay in f32.
    assert jnp.allclose(out, ref, atol=2e-2, rtol=2e-2), (
        "mismatch vs reference, max abs diff = %r"
        % float(jnp.max(jnp.abs(out - ref))))

    print("KERNEL_OK")
</pallas_src>

<mosaic_0001>
module attributes {stable_mosaic.version = 11 : i64} {
  func.func @_collective_classifier_kernel(%arg0: i32, %arg1: memref<2x128xf32, #tpu.memory_space<vmem>>, %arg2: memref<128x128xf32, #tpu.memory_space<vmem>>, %arg3: memref<128x64xbf16, #tpu.memory_space<vmem>>, %arg4: memref<1x128xf32, #tpu.memory_space<vmem>>, %arg5: memref<1x128xf32, #tpu.memory_space<vmem>>, %arg6: memref<2x64xf32, #tpu.memory_space<vmem>>) attributes {dimension_semantics = [#tpu.dimension_semantics<parallel>], iteration_bounds = array<i64: 1>, scalar_prefetch = 0 : i64, scratch_operands = 0 : i64, tpu.core_type = #tpu.core_type<tc>, window_params = [{transform_indices = @transform_0, window_bounds = array<i64: 2, 128>}, {pipeline_mode = #tpu.pipeline_mode<synchronous>, transform_indices = @transform_1, window_bounds = array<i64: 128, 128>}, {pipeline_mode = #tpu.pipeline_mode<synchronous>, transform_indices = @transform_2, window_bounds = array<i64: 128, 64>}, {pipeline_mode = #tpu.pipeline_mode<synchronous>, transform_indices = @transform_3, window_bounds = array<i64: 1, 128>}, {pipeline_mode = #tpu.pipeline_mode<synchronous>, transform_indices = @transform_4, window_bounds = array<i64: 1, 128>}, {transform_indices = @transform_5, window_bounds = array<i64: 2, 64>}]} {
    %c0 = arith.constant 0 : index
    %c0_0 = arith.constant 0 : index
    %0 = vector.load %arg1[%c0, %c0_0] : memref<2x128xf32, #tpu.memory_space<vmem>>, vector<2x128xf32>
    %c0_1 = arith.constant 0 : index
    %c0_2 = arith.constant 0 : index
    %1 = vector.load %arg2[%c0_1, %c0_2] : memref<128x128xf32, #tpu.memory_space<vmem>>, vector<128x128xf32>
    %cst = arith.constant dense<0.000000e+00> : vector<2x128xf32>
    %2 = tpu.matmul %0, %1, %cst {dimension_numbers = #tpu.dot_dimension_numbers<[1], [0], [0], [1], [0, 0, 1, 1], [], []>} : vector<2x128xf32>, vector<128x128xf32>, vector<2x128xf32> -> vector<2x128xf32>
    %3 = arith.subf %0, %2 : vector<2x128xf32>
    %4 = arith.mulf %3, %3 : vector<2x128xf32>
    %cst_3 = arith.constant dense<0.000000e+00> : vector<2x128xf32>
    %5 = tpu.matmul %4, %1, %cst_3 {dimension_numbers = #tpu.dot_dimension_numbers<[1], [0], [0], [1], [0, 0, 1, 1], [], []>} : vector<2x128xf32>, vector<128x128xf32>, vector<2x128xf32> -> vector<2x128xf32>
    %cst_4 = arith.constant 9.99999974E-6 : f32
    %6 = vector.broadcast %cst_4 : f32 to vector<2x128xf32>
    %7 = arith.addf %5, %6 : vector<2x128xf32>
    %8 = math.rsqrt %7 : vector<2x128xf32>
    %9 = arith.mulf %3, %8 : vector<2x128xf32>
    %c0_5 = arith.constant 0 : index
    %c0_6 = arith.constant 0 : index
    %10 = vector.load %arg4[%c0_5, %c0_6] : memref<1x128xf32, #tpu.memory_space<vmem>>, vector<1x128xf32>
    %11 = vector.broadcast %10 : vector<1x128xf32> to vector<2x128xf32>
    %12 = arith.mulf %9, %11 : vector<2x128xf32>
    %c0_7 = arith.constant 0 : index
    %c0_8 = arith.constant 0 : index
    %13 = vector.load %arg5[%c0_7, %c0_8] : memref<1x128xf32, #tpu.memory_space<vmem>>, vector<1x128xf32>
    %14 = vector.broadcast %13 : vector<1x128xf32> to vector<2x128xf32>
    %15 = arith.addf %12, %14 : vector<2x128xf32>
    %16 = arith.truncf %15 : vector<2x128xf32> to vector<2x128xbf16>
    %c0_9 = arith.constant 0 : index
    %c0_10 = arith.constant 0 : index
    %17 = vector.load %arg3[%c0_9, %c0_10] : memref<128x64xbf16, #tpu.memory_space<vmem>>, vector<128x64xbf16>
    %cst_11 = arith.constant dense<0.000000e+00> : vector<2x64xf32>
    %18 = tpu.matmul %16, %17, %cst_11 {dimension_numbers = #tpu.dot_dimension_numbers<[1], [0], [0], [1], [0, 0, 1, 1], [], []>} : vector<2x128xbf16>, vector<128x64xbf16>, vector<2x64xf32> -> vector<2x64xf32>
    %19 = arith.negf %18 : vector<2x64xf32>
    %20 = math.exp %19 : vector<2x64xf32>
    %cst_12 = arith.constant 1.000000e+00 : f32
    %21 = vector.broadcast %cst_12 : f32 to vector<2x64xf32>
    %22 = arith.addf %21, %20 : vector<2x64xf32>
    %23 = arith.divf %21, %22 : vector<2x64xf32>
    %24 = arith.mulf %18, %23 : vector<2x64xf32>
    %c0_13 = arith.constant 0 : index
    %c0_14 = arith.constant 0 : index
    %25 = vector.load %arg6[%c0_13, %c0_14] : memref<2x64xf32, #tpu.memory_space<vmem>>, vector<2x64xf32>
    tpu.vector_store %arg6[%c0_13, %c0_14], %24 {strides = array<i32>} : memref<2x64xf32, #tpu.memory_space<vmem>>, vector<2x64xf32>,
    return
  }
  func.func @transform_0(%arg0: i32) -> (i32, i32) {
    %c0_i32 = arith.constant 0 : i32
    %c0_i32_0 = arith.constant 0 : i32
    return %arg0, %c0_i32 : i32, i32
  }
  func.func @transform_1(%arg0: i32) -> (i32, i32) {
    %c0_i32 = arith.constant 0 : i32
    %c0_i32_0 = arith.constant 0 : i32
    %c0_i32_1 = arith.constant 0 : i32
    return %c0_i32, %c0_i32_0 : i32, i32
  }
  func.func @transform_2(%arg0: i32) -> (i32, i32) {
    %c0_i32 = arith.constant 0 : i32
    %c0_i32_0 = arith.constant 0 : i32
    %c0_i32_1 = arith.constant 0 : i32
    return %c0_i32, %c0_i32_0 : i32, i32
  }
  func.func @transform_3(%arg0: i32) -> (i32, i32) {
    %c0_i32 = arith.constant 0 : i32
    %c0_i32_0 = arith.constant 0 : i32
    %c0_i32_1 = arith.constant 0 : i32
    return %c0_i32, %c0_i32_0 : i32, i32
  }
  func.func @transform_4(%arg0: i32) -> (i32, i32) {
    %c0_i32 = arith.constant 0 : i32
    %c0_i32_0 = arith.constant 0 : i32
    %c0_i32_1 = arith.constant 0 : i32
    return %c0_i32, %c0_i32_0 : i32, i32
  }
  func.func @transform_5(%arg0: i32) -> (i32, i32) {
    %c0_i32 = arith.constant 0 : i32
    %c0_i32_0 = arith.constant 0 : i32
    return %arg0, %c0_i32 : i32, i32
  }
}

</mosaic_0001>

<llo_original>
// kernel: tpu_custom_call.1
$region0: #{tpu_custom_call.1}
  #allocation0 [shape = 'u32[]', space=smem, size = 0x4, offset = 0x4, fixed_abs, tag = 'smem constant byte address 0x4 - core index']
  #allocation1 [shape = 'u32[144,128]{1,0:T(1,128)}', space=vmem, size = 0x12000, scoped, tag = 'internal scratch']
  %s0 = inlined_call_operand.vmem [shape: f32[2,128], index: 0, kind: input, shape index: {}]
  %s1 = inlined_call_operand.hbm [shape: f32[128,128], index: 1, kind: input, shape index: {}]
  %s2 = inlined_call_operand.vmem [shape: bf16[128,64], index: 2, kind: input, shape index: {}]
  %s3 = inlined_call_operand.vmem [shape: f32[1,128], index: 3, kind: input, shape index: {}]
  %s4 = inlined_call_operand.vmem [shape: f32[1,128], index: 4, kind: input, shape index: {}]
  %s5 = inlined_call_operand.hbm [shape: f32[2,64], index: 5, kind: output, shape index: {}]
  %s6 = sld [smem:[#allocation0]]
  $region34: #{tpu_custom_call.1} parent=0
    _
  %s8 = ssub.s32 1, %s6
  %s9 = scalar_select 0, %s8, %s6
  $region1: #{tpu_custom_call.1} parent=0
    #allocation2 [shape = 'u8[65536]{0}', space=vmem, size = 0x10000, scoped, tag = 'input window, operand 1, single buffered']
    #allocation3 [shape = 's32[1]{0}', space=sflag, size = 0x4, scoped, tag = 'scoped memory for tpu_custom_call.1']
    #allocation4 [shape = 's32[1]{0}', space=sflag, size = 0x4, scoped, tag = 'scoped memory for tpu_custom_call.1']
    #allocation5 [shape = 'u8[1024]{0}', space=vmem, size = 0x400, scoped, tag = 'output window, operand 0, single buffered']
    %10 = vsyncpa [#allocation3], 0
    %11 = vsyncpa [#allocation4], 0
    // Predicated region
    $region2: #{tpu_custom_call.1} parent=1 // pred_check
      _
    $region3: #{tpu_custom_call.1} parent=1 // pred_check_branch
      %13 = sbr.rel (0) target = $region5
    $region4: #{tpu_custom_call.1} parent=1 // pred_region
      _
    $region5: #{tpu_custom_call.1} parent=1 // pred_fallthru
      _
    // Predicated region
    $region6: #{tpu_custom_call.1} parent=1 // pred_check
      _
    $region7: #{tpu_custom_call.1} parent=1 // pred_check_branch
      %15 = sbr.rel (0) target = $region9
    $region8: #{tpu_custom_call.1} parent=1 // pred_region
      %s17 = ssub.s32 2048, 2048
      %18 = vsyncadd [#allocation3], %s17
      %s19 = sshll.u32 [#allocation2], 4
      %s20 = int_to_ptr.vmem [resolvable:$true] %s19
      %25 = dma.hbm_to_vmem [thread:$0]  %s1, 2048, %s20, [#allocation3], 128, 128, 8
    $region9: #{tpu_custom_call.1} parent=1 // pred_fallthru
      _
    // Predicated region
    $region10: #{tpu_custom_call.1} parent=1 // pred_check
      _
    $region11: #{tpu_custom_call.1} parent=1 // pred_check_branch
      %27 = sbr.rel (0) target = $region13
    $region12: #{tpu_custom_call.1} parent=1 // pred_region
      _
    $region13: #{tpu_custom_call.1} parent=1 // pred_fallthru
      _
    // Predicated region
    $region14: #{tpu_custom_call.1} parent=1 // pred_check
      _
    $region15: #{tpu_custom_call.1} parent=1 // pred_check_branch
      %29 = sbr.rel (0) target = $region17
    $region16: #{tpu_custom_call.1} parent=1 // pred_region
      _
    $region17: #{tpu_custom_call.1} parent=1 // pred_fallthru
      _
    // Predicated region
    $region18: #{tpu_custom_call.1} parent=1 // pred_check
      _
    $region19: #{tpu_custom_call.1} parent=1 // pred_check_branch
      %31 = sbr.rel (0) target = $region21
    $region20: #{tpu_custom_call.1} parent=1 // pred_region
      _
    $region21: #{tpu_custom_call.1} parent=1 // pred_fallthru
      _
    // Predicated region
    $region22: #{tpu_custom_call.1} parent=1 // pred_check
      _
    $region23: #{tpu_custom_call.1} parent=1 // pred_check_branch
      %33 = sbr.rel (0) target = $region25
    $region24: #{tpu_custom_call.1} parent=1 // pred_region
      %34 = dma.done [#allocation3], 2048
    $region25: #{tpu_custom_call.1} parent=1 // pred_fallthru
      _
    %v36 = vld [vmem:[%s0] sm:$0x3]
    %v37 = vld [vmem:[#allocation2] sm:$0xff]
    %v38 = vld [vmem:[#allocation2 + $0x8] sm:$0xff]
    %v39 = vld [vmem:[#allocation2 + $0x10] sm:$0xff]
    %v40 = vld [vmem:[#allocation2 + $0x18] sm:$0xff]
    %v41 = vld [vmem:[#allocation2 + $0x20] sm:$0xff]
    %v42 = vld [vmem:[#allocation2 + $0x28] sm:$0xff]
    %v43 = vld [vmem:[#allocation2 + $0x30] sm:$0xff]
    %v44 = vld [vmem:[#allocation2 + $0x38] sm:$0xff]
    %v45 = vld [vmem:[#allocation2 + $0x40] sm:$0xff]
    %v46 = vld [vmem:[#allocation2 + $0x48] sm:$0xff]
    %v47 = vld [vmem:[#allocation2 + $0x50] sm:$0xff]
    %v48 = vld [vmem:[#allocation2 + $0x58] sm:$0xff]
    %v49 = vld [vmem:[#allocation2 + $0x60] sm:$0xff]
    %v50 = vld [vmem:[#allocation2 + $0x68] sm:$0xff]
    %v51 = vld [vmem:[#allocation2 + $0x70] sm:$0xff]
    %v52 = vld [vmem:[#allocation2 + $0x78] sm:$0xff]
    %53 = vmatprep.subr.mxu0 0.0
    %54 = vmatpush1.msra.mxu0 %v37
    %55 = vmatprep.subr.mxu0 0.0
    %56 = vmatpush1.msra.mxu0 %v38
    %57 = vmatprep.subr.mxu0 0.0
    %58 = vmatpush1.msra.mxu0 %v39
    %59 = vmatprep.subr.mxu0 0.0
    %60 = vmatpush1.msra.mxu0 %v40
    %61 = vmatprep.subr.mxu0 0.0
    %62 = vmatpush1.msra.mxu0 %v41
    %63 = vmatprep.subr.mxu0 0.0
    %64 = vmatpush1.msra.mxu0 %v42
    %65 = vmatprep.subr.mxu0 0.0
    %66 = vmatpush1.msra.mxu0 %v43
    %67 = vmatprep.subr.mxu0 0.0
    %68 = vmatpush1.msra.mxu0 %v44
    %69 = vmatprep.subr.mxu0 0.0
    %70 = vmatpush1.msra.mxu0 %v45
    %71 = vmatprep.subr.mxu0 0.0
    %72 = vmatpush1.msra.mxu0 %v46
    %73 = vmatprep.subr.mxu0 0.0
    %74 = vmatpush1.msra.mxu0 %v47
    %75 = vmatprep.subr.mxu0 0.0
    %76 = vmatpush1.msra.mxu0 %v48
    %77 = vmatprep.subr.mxu0 0.0
    %78 = vmatpush1.msra.mxu0 %v49
    %79 = vmatprep.subr.mxu0 0.0
    %80 = vmatpush1.msra.mxu0 %v50
    %81 = vmatprep.subr.mxu0 0.0
    %82 = vmatpush1.msra.mxu0 %v51
    %83 = vmatprep.subr.mxu0 0.0
    %84 = vmatpush1.msra.mxu0 %v52
    %85 = vmatprep.subr.mxu0 0.0
    %86 = vmatpush1.msra.mxu0 0.0
    %87 = vmatprep.subr.mxu0 0.0
    %88 = vmatpush1.msra.mxu0 0.0
    %89 = vmatprep.subr.mxu0 0.0
    %90 = vmatpush1.msra.mxu0 0.0
    %91 = vmatprep.subr.mxu0 0.0
    %92 = vmatpush1.msra.mxu0 0.0
    %93 = vmatprep.subr.mxu0 0.0
    %94 = vmatpush1.msra.mxu0 0.0
    %95 = vmatprep.subr.mxu0 0.0
    %96 = vmatpush1.msra.mxu0 0.0
    %97 = vmatprep.subr.mxu0 0.0
    %98 = vmatpush1.msra.mxu0 0.0
    %99 = vmatprep.subr.mxu0 0.0
    %100 = vmatpush1.msra.mxu0 0.0
    %101 = vmatprep.subr.mxu0 0.0
    %102 = vmatpush1.msra.mxu0 0.0
    %103 = vmatprep.subr.mxu0 0.0
    %104 = vmatpush1.msra.mxu0 0.0
    %105 = vmatprep.subr.mxu0 0.0
    %106 = vmatpush1.msra.mxu0 0.0
    %107 = vmatprep.subr.mxu0 0.0
    %108 = vmatpush1.msra.mxu0 0.0
    %109 = vmatprep.subr.mxu0 0.0
    %110 = vmatpush1.msra.mxu0 0.0
    %111 = vmatprep.subr.mxu0 0.0
    %112 = vmatpush1.msra.mxu0 0.0
    %113 = vmatprep.subr.mxu0 0.0
    %114 = vmatpush1.msra.mxu0 0.0
    %115 = vmatprep.subr.mxu0 0.0
    %116 = vmatpush1.msra.mxu0 0.0
    %117 = vmatprep.mubr.f32.mxu0 0.0
    %118 = vmatmul.mubr.f32.gmra.mrb[0].mxu0 %v36
    %v119 = vpop.f32.mrb[0].mxu0
    %v120 = vadd.f32 0.0, %v119
    %v121 = vpop.f32.mrb[0].mxu0
    %122 = vdwg.mxu0
    %v123 = vsub.f32 %v36, %v120
    %v124 = vmul.f32 %v123, %v123
    %125 = vmatprep.subr.mxu0 0.0
    %126 = vmatpush1.msra.mxu0 %v37
    %127 = vmatprep.subr.mxu0 0.0
    %128 = vmatpush1.msra.mxu0 %v38
    %129 = vmatprep.subr.mxu0 0.0
    %130 = vmatpush1.msra.mxu0 %v39
    %131 = vmatprep.subr.mxu0 0.0
    %132 = vmatpush1.msra.mxu0 %v40
    %133 = vmatprep.subr.mxu0 0.0
    %134 = vmatpush1.msra.mxu0 %v41
    %135 = vmatprep.subr.mxu0 0.0
    %136 = vmatpush1.msra.mxu0 %v42
    %137 = vmatprep.subr.mxu0 0.0
    %138 = vmatpush1.msra.mxu0 %v43
    %139 = vmatprep.subr.mxu0 0.0
    %140 = vmatpush1.msra.mxu0 %v44
    %141 = vmatprep.subr.mxu0 0.0
    %142 = vmatpush1.msra.mxu0 %v45
    %143 = vmatprep.subr.mxu0 0.0
    %144 = vmatpush1.msra.mxu0 %v46
    %145 = vmatprep.subr.mxu0 0.0
    %146 = vmatpush1.msra.mxu0 %v47
    %147 = vmatprep.subr.mxu0 0.0
    %148 = vmatpush1.msra.mxu0 %v48
    %149 = vmatprep.subr.mxu0 0.0
    %150 = vmatpush1.msra.mxu0 %v49
    %151 = vmatprep.subr.mxu0 0.0
    %152 = vmatpush1.msra.mxu0 %v50
    %153 = vmatprep.subr.mxu0 0.0
    %154 = vmatpush1.msra.mxu0 %v51
    %155 = vmatprep.subr.mxu0 0.0
    %156 = vmatpush1.msra.mxu0 %v52
    %157 = vmatprep.subr.mxu0 0.0
    %158 = vmatpush1.msra.mxu0 0.0
    %159 = vmatprep.subr.mxu0 0.0
    %160 = vmatpush1.msra.mxu0 0.0
    %161 = vmatprep.subr.mxu0 0.0
    %162 = vmatpush1.msra.mxu0 0.0
    %163 = vmatprep.subr.mxu0 0.0
    %164 = vmatpush1.msra.mxu0 0.0
    %165 = vmatprep.subr.mxu0 0.0
    %166 = vmatpush1.msra.mxu0 0.0
    %167 = vmatprep.subr.mxu0 0.0
    %168 = vmatpush1.msra.mxu0 0.0
    %169 = vmatprep.subr.mxu0 0.0
    %170 = vmatpush1.msra.mxu0 0.0
    %171 = vmatprep.subr.mxu0 0.0
    %172 = vmatpush1.msra.mxu0 0.0
    %173 = vmatprep.subr.mxu0 0.0
    %174 = vmatpush1.msra.mxu0 0.0
    %175 = vmatprep.subr.mxu0 0.0
    %176 = vmatpush1.msra.mxu0 0.0
    %177 = vmatprep.subr.mxu0 0.0
    %178 = vmatpush1.msra.mxu0 0.0
    %179 = vmatprep.subr.mxu0 0.0
    %180 = vmatpush1.msra.mxu0 0.0
    %181 = vmatprep.subr.mxu0 0.0
    %182 = vmatpush1.msra.mxu0 0.0
    %183 = vmatprep.subr.mxu0 0.0
    %184 = vmatpush1.msra.mxu0 0.0
    %185 = vmatprep.subr.mxu0 0.0
    %186 = vmatpush1.msra.mxu0 0.0
    %187 = vmatprep.subr.mxu0 0.0
    %188 = vmatpush1.msra.mxu0 0.0
    %189 = vmatprep.mubr.f32.mxu0 0.0
    %190 = vmatmul.mubr.f32.gmra.mrb[0].mxu0 %v124
    %v191 = vpop.f32.mrb[0].mxu0
    %v192 = vadd.f32 1e-05, %v191
    %v193 = vpop.f32.mrb[0].mxu0
    %194 = vdwg.mxu0
    %v195 = vrsqrt.pop %v192
    %v196 = vmul.f32 %v123, %v195
    %v197 = vld [vmem:[%s3] sm:$0x1]
    %v199 = vlaneseq
    %v200 = vshrl.u32 %v199, 7
    %v201 = vsub.s32 0, %v200
    %v202 = vrot.slane %v197, %v201
    %v204 = vmul.f32 %v196, %v202
    %v205 = vld [vmem:[%s4] sm:$0x1]
    %v207 = vlaneseq
    %v208 = vshrl.u32 %v207, 7
    %v209 = vsub.s32 0, %v208
    %v210 = vrot.slane %v205, %v209
    %v212 = vadd.f32 %v204, %v210
    %v213 = vpack.c.bf16 %v212, %v212
    %v214 = vld [vmem:[%s2] sm:$0xf]
    %v215 = vld [vmem:[%s2 + $0x4] sm:$0xf]
    %v216 = vld [vmem:[%s2 + $0x8] sm:$0xf]
    %v217 = vld [vmem:[%s2 + $0xc] sm:$0xf]
    %v218 = vld [vmem:[%s2 + $0x10] sm:$0xf]
    %v219 = vld [vmem:[%s2 + $0x14] sm:$0xf]
    %v220 = vld [vmem:[%s2 + $0x18] sm:$0xf]
    %v221 = vld [vmem:[%s2 + $0x1c] sm:$0xf]
    %v222 = vld [vmem:[%s2 + $0x20] sm:$0xf]
    %v223 = vld [vmem:[%s2 + $0x24] sm:$0xf]
    %v224 = vld [vmem:[%s2 + $0x28] sm:$0xf]
    %v225 = vld [vmem:[%s2 + $0x2c] sm:$0xf]
    %v226 = vld [vmem:[%s2 + $0x30] sm:$0xf]
    %v227 = vld [vmem:[%s2 + $0x34] sm:$0xf]
    %v228 = vld [vmem:[%s2 + $0x38] sm:$0xf]
    %v229 = vld [vmem:[%s2 + $0x3c] sm:$0xf]
    %v246 = vunpack.c.l.b16 %v214
    %v247 = vunpack.c.l.b16 %v215
    %v248 = vunpack.c.l.b16 %v216
    %v249 = vunpack.c.l.b16 %v217
    %v250 = vunpack.c.l.b16 %v218
    %v251 = vunpack.c.l.b16 %v219
    %v252 = vunpack.c.l.b16 %v220
    %v253 = vunpack.c.l.b16 %v221
    %v254 = vunpack.c.l.b16 %v222
    %v255 = vunpack.c.l.b16 %v223
    %v256 = vunpack.c.l.b16 %v224
    %v257 = vunpack.c.l.b16 %v225
    %v258 = vunpack.c.l.b16 %v226
    %v259 = vunpack.c.l.b16 %v227
    %v260 = vunpack.c.l.b16 %v228
    %v261 = vunpack.c.l.b16 %v229
    %v262 = vpack.c.b16 %v247, %v246
    %v263 = vpack.c.b16 %v249, %v248
    %v264 = vpack.c.b16 %v251, %v250
    %v265 = vpack.c.b16 %v253, %v252
    %v266 = vpack.c.b16 %v255, %v254
    %v267 = vpack.c.b16 %v257, %v256
    %v268 = vpack.c.b16 %v259, %v258
    %v269 = vpack.c.b16 %v261, %v260
    %278 = vmatprep.subr.bf16.mxu0 0
    %279 = vmatpush1.bf16.msra.mxu0 %v262
    %280 = vmatprep.subr.bf16.mxu0 0
    %281 = vmatpush1.bf16.msra.mxu0 %v263
    %282 = vmatprep.subr.bf16.mxu0 0
    %283 = vmatpush1.bf16.msra.mxu0 %v264
    %284 = vmatprep.subr.bf16.mxu0 0
    %285 = vmatpush1.bf16.msra.mxu0 %v265
    %286 = vmatprep.subr.bf16.mxu0 0
    %287 = vmatpush1.bf16.msra.mxu0 %v266
    %288 = vmatprep.subr.bf16.mxu0 0
    %289 = vmatpush1.bf16.msra.mxu0 %v267
    %290 = vmatprep.subr.bf16.mxu0 0
    %291 = vmatpush1.bf16.msra.mxu0 %v268
    %292 = vmatprep.subr.bf16.mxu0 0
    %293 = vmatpush1.bf16.msra.mxu0 %v269
    %294 = vmatprep.subr.bf16.mxu0 0
    %295 = vmatpush1.bf16.msra.mxu0 0
    %296 = vmatprep.subr.bf16.mxu0 0
    %297 = vmatpush1.bf16.msra.mxu0 0
    %298 = vmatprep.subr.bf16.mxu0 0
    %299 = vmatpush1.bf16.msra.mxu0 0
    %300 = vmatprep.subr.bf16.mxu0 0
    %301 = vmatpush1.bf16.msra.mxu0 0
    %302 = vmatprep.subr.bf16.mxu0 0
    %303 = vmatpush1.bf16.msra.mxu0 0
    %304 = vmatprep.subr.bf16.mxu0 0
    %305 = vmatpush1.bf16.msra.mxu0 0
    %306 = vmatprep.subr.bf16.mxu0 0
    %307 = vmatpush1.bf16.msra.mxu0 0
    %308 = vmatprep.subr.bf16.mxu0 0
    %309 = vmatpush1.bf16.msra.mxu0 0
    %310 = vmatprep.mubr.bf16.mxu0 0
    %311 = vmatmul.mubr.bf16.gmra.mrb[0].mxu0 %v213
    %v312 = vpop.f32.mrb[0].mxu0
    %v313 = vadd.f32 0.0, %v312
    %v314 = vpop.f32.mrb[0].mxu0
    %v315 = vpop.f32.mrb[0].mxu0
    %v316 = vpop.f32.mrb[0].mxu0
    %317 = vdwg.mxu0
    %v318 = vxor.u32 %v313, 2147483648
    %v319 = vmul.f32 %v318, 1.442695
    %v320 = vpow.pop %v319
    %v321 = vadd.f32 %v320, 1.0
    %v322 = vrcp.pop %v321
    %v323 = vmul.f32 1.0, %v322
    %v324 = vmul.f32 %v313, %v323
    %vm325 = vcmask 517120
    %326 = vst.msk [vmem:[#allocation5] sm:$0x3] %vm325, %v324
    // Predicated region
    $region26: #{tpu_custom_call.1} parent=1 // pred_check
      _
    $region27: #{tpu_custom_call.1} parent=1 // pred_check_branch
      %328 = sbr.rel (0) target = $region29
    $region28: #{tpu_custom_call.1} parent=1 // pred_region
      %s330 = ssub.s32 32, 32
      %331 = vsyncadd [#allocation4], %s330
      %s333 = sshll.u32 [#allocation5], 4
      %s334 = int_to_ptr.vmem [resolvable:$true] %s333
      %336 = dma.vmem_to_hbm [thread:$0]  %s334, 32, %s5, [#allocation4]
    $region29: #{tpu_custom_call.1} parent=1 // pred_fallthru
      _
    // Predicated region
    $region30: #{tpu_custom_call.1} parent=1 // pred_check
      _
    $region31: #{tpu_custom_call.1} parent=1 // pred_check_branch
      %338 = sbr.rel (0) target = $region33
    $region32: #{tpu_custom_call.1} parent=1 // pred_region
      %339 = dma.done [#allocation4], 32
    $region33: #{tpu_custom_call.1} parent=1 // pred_fallthru
      _
    %340 = vsyncpa [#allocation3], 1
    %341 = vsyncpa [#allocation4], 1

</llo_original>
